<compile_context>
chip_gen: v7x
topology: tpu7x:2x2x1
jax: 0.10.0
libtpu: 0.0.40
codegen_flags: <defaults>
</compile_context>

<pallas_src>
import jax
import jax.numpy as jnp
from jax.experimental import pallas as pl
from jax.experimental.pallas import tpu as pltpu


def classifier_kernel(x_ref, w1_ref, b1_ref, w2_ref, b2_ref, w3_ref, b3_ref,
                      w4_ref, b4_ref, o_ref):
    # x tile is batch-major (tb, F); weights are PyTorch-layout (out, in),
    # biases are (out, 1).  All activations are class-major (out, tb): the batch
    # rides the 128-lane axis, so every intermediate and the output are lane-dense.
    x = x_ref[...]

    # Layer 1: contract the feature axis of both operands -> (5, tb).
    h = jax.lax.dot_general(w1_ref[...], x, (((1,), (1,)), ((), ())),
                            preferred_element_type=jnp.float32)
    h = jnp.maximum(h + b1_ref[...], 0.0)
    # Layers 2..4: plain (out, in) @ (in, tb) matmuls, bias broadcast over lanes.
    h = jnp.maximum(
        jnp.dot(w2_ref[...], h, preferred_element_type=jnp.float32) + b2_ref[...], 0.0)
    h = jnp.maximum(
        jnp.dot(w3_ref[...], h, preferred_element_type=jnp.float32) + b3_ref[...], 0.0)
    logits = jnp.dot(w4_ref[...], h, preferred_element_type=jnp.float32) + b4_ref[...]

    # 2-class softmax in sigmoid form: p1 = 1/(1+exp(l0-l1)), p0 = 1-p1.
    # No cross-lane reductions, exact math (EUP is idle in this HBM-bound kernel).
    d = logits[0:1, :] - logits[1:2, :]
    p1 = 1.0 / (1.0 + jnp.exp(d))                       # (1, tb)
    row = jax.lax.broadcasted_iota(jnp.int32, o_ref.shape, 0)
    o_ref[...] = jnp.where(row == 0, 1.0 - p1, p1).astype(o_ref.dtype)


def classifier_forward(x, params, *, block_rows=None,
                       target_block_bytes=4 * 1024 * 1024):
    """x: (batch, features) -> softmax probabilities (batch, 2)."""
    batch, features = x.shape
    w1, b1, w2, b2, w3, b3, w4, b4 = params

    # Byte-targeted batch tile: ~target_block_bytes of x per (double-buffered)
    # input buffer, rounded to a multiple of 128 so the output tile is lane-aligned.
    # Small batches collapse to a single full-array block (no alignment constraints).
    bytes_per_row = features * x.dtype.itemsize
    tb = max(128, (target_block_bytes // bytes_per_row) // 128 * 128)
    if block_rows is not None:
        tb = max(128, block_rows // 128 * 128)
    if tb >= batch:
        tb = batch
    num_blocks = pl.cdiv(batch, tb)
    # Only the tiny (2, padded) output is over-allocated; x is NOT padded in HBM.
    padded = num_blocks * tb

    out = pl.pallas_call(
        classifier_kernel,
        out_shape=jax.ShapeDtypeStruct((2, padded), jnp.float32),
        grid_spec=pltpu.PrefetchScalarGridSpec(
            num_scalar_prefetch=0,
            grid=(num_blocks,),
            in_specs=[
                pl.BlockSpec((tb, features), lambda i: (i, 0)),  # x: streamed row tiles
                # Params: full-array blocks, constant index_map -> DMA'd once,
                # resident in VMEM across all grid steps.
                pl.BlockSpec(w1.shape, lambda i: (0, 0)),
                pl.BlockSpec(b1.shape, lambda i: (0, 0)),
                pl.BlockSpec(w2.shape, lambda i: (0, 0)),
                pl.BlockSpec(b2.shape, lambda i: (0, 0)),
                pl.BlockSpec(w3.shape, lambda i: (0, 0)),
                pl.BlockSpec(b3.shape, lambda i: (0, 0)),
                pl.BlockSpec(w4.shape, lambda i: (0, 0)),
                pl.BlockSpec(b4.shape, lambda i: (0, 0)),
            ],
            out_specs=pl.BlockSpec((2, tb), lambda i: (0, i)),
        ),
        compiler_params=pltpu.CompilerParams(
            dimension_semantics=("parallel",),
            # 2 x-buffers (~4 MiB each) + in-kernel temporaries + tiny params/out:
            # comfortably inside every generation's VMEM (incl. v7x's 64 MiB
            # physical) and overrides v5e's 16 MiB default scope so
            # double-buffering stays intact.
            vmem_limit_bytes=48 * 1024 * 1024,
        ),
    )(x, w1, b1, w2, b2, w3, b3, w4, b4)

    # (2, padded) -> (batch, 2): tiny relayout, negligible vs. streaming x.
    return out[:, :batch].T


def init_linear(key, fan_in, fan_out):
    # PyTorch nn.Linear default init U(-1/sqrt(fan_in), 1/sqrt(fan_in)),
    # weight layout (out, in), bias (out, 1).
    kw, kb = jax.random.split(key)
    bound = 1.0 / (fan_in ** 0.5)
    w = jax.random.uniform(kw, (fan_out, fan_in), jnp.float32, -bound, bound)
    b = jax.random.uniform(kb, (fan_out, 1), jnp.float32, -bound, bound)
    return w, b


def init_params(key, features):
    k1, k2, k3, k4 = jax.random.split(key, 4)
    w1, b1 = init_linear(k1, features, 5)
    w2, b2 = init_linear(k2, 5, 10)
    w3, b3 = init_linear(k3, 10, 15)
    w4, b4 = init_linear(k4, 15, 2)
    return (w1, b1, w2, b2, w3, b3, w4, b4)


def reference_forward(x, params):
    w1, b1, w2, b2, w3, b3, w4, b4 = params
    h = jnp.maximum(x @ w1.T + b1.T, 0.0)
    h = jnp.maximum(h @ w2.T + b2.T, 0.0)
    h = jnp.maximum(h @ w3.T + b3.T, 0.0)
    logits = h @ w4.T + b4.T
    return jax.nn.softmax(logits, axis=1)


if __name__ == "__main__":
    key = jax.random.PRNGKey(0)
    k_x, k_p, k_x2 = jax.random.split(key, 3)

    # Small demo shapes implied by the module.
    batch, features = 8, 32
    x = jax.random.normal(k_x, (batch, features), dtype=jnp.float32)
    params = init_params(k_p, features)

    out = jax.block_until_ready(classifier_forward(x, params))
    ref = reference_forward(x, params)
    assert out.shape == (batch, 2)
    assert jnp.allclose(out, ref, atol=1e-4, rtol=1e-4)
    assert jnp.allclose(jnp.sum(out, axis=1), jnp.ones((batch,)), atol=1e-5)

    # Exercise the multi-tile grid + ragged (non-divisible) last block, with no
    # wrapper-side padding of x.
    batch2 = 300
    x2 = jax.random.normal(k_x2, (batch2, features), dtype=jnp.float32)
    out2 = jax.block_until_ready(classifier_forward(x2, params, block_rows=128))
    ref2 = reference_forward(x2, params)
    assert out2.shape == (batch2, 2)
    assert jnp.allclose(out2, ref2, atol=1e-4, rtol=1e-4)
    assert jnp.allclose(jnp.sum(out2, axis=1), jnp.ones((batch2,)), atol=1e-5)

    print("KERNEL_OK")
</pallas_src>

<mosaic_0001>
module attributes {stable_mosaic.version = 11 : i64} {
  func.func @classifier_kernel(%arg0: i32, %arg1: memref<8x32xf32, #tpu.memory_space<vmem>>, %arg2: memref<5x32xf32, #tpu.memory_space<vmem>>, %arg3: memref<5x1xf32, #tpu.memory_space<vmem>>, %arg4: memref<10x5xf32, #tpu.memory_space<vmem>>, %arg5: memref<10x1xf32, #tpu.memory_space<vmem>>, %arg6: memref<15x10xf32, #tpu.memory_space<vmem>>, %arg7: memref<15x1xf32, #tpu.memory_space<vmem>>, %arg8: memref<2x15xf32, #tpu.memory_space<vmem>>, %arg9: memref<2x1xf32, #tpu.memory_space<vmem>>, %arg10: memref<2x8xf32, #tpu.memory_space<vmem>>) attributes {dimension_semantics = [#tpu.dimension_semantics<parallel>], iteration_bounds = array<i64: 1>, scalar_prefetch = 0 : i64, scratch_operands = 0 : i64, tpu.core_type = #tpu.core_type<tc>, window_params = [{transform_indices = @transform_0, window_bounds = array<i64: 8, 32>}, {pipeline_mode = #tpu.pipeline_mode<synchronous>, transform_indices = @transform_1, window_bounds = array<i64: 5, 32>}, {pipeline_mode = #tpu.pipeline_mode<synchronous>, transform_indices = @transform_2, window_bounds = array<i64: 5, 1>}, {pipeline_mode = #tpu.pipeline_mode<synchronous>, transform_indices = @transform_3, window_bounds = array<i64: 10, 5>}, {pipeline_mode = #tpu.pipeline_mode<synchronous>, transform_indices = @transform_4, window_bounds = array<i64: 10, 1>}, {pipeline_mode = #tpu.pipeline_mode<synchronous>, transform_indices = @transform_5, window_bounds = array<i64: 15, 10>}, {pipeline_mode = #tpu.pipeline_mode<synchronous>, transform_indices = @transform_6, window_bounds = array<i64: 15, 1>}, {pipeline_mode = #tpu.pipeline_mode<synchronous>, transform_indices = @transform_7, window_bounds = array<i64: 2, 15>}, {pipeline_mode = #tpu.pipeline_mode<synchronous>, transform_indices = @transform_8, window_bounds = array<i64: 2, 1>}, {transform_indices = @transform_9, window_bounds = array<i64: 2, 8>}]} {
    %c0 = arith.constant 0 : index
    %c0_0 = arith.constant 0 : index
    %0 = vector.load %arg1[%c0, %c0_0] : memref<8x32xf32, #tpu.memory_space<vmem>>, vector<8x32xf32>
    %c0_1 = arith.constant 0 : index
    %c0_2 = arith.constant 0 : index
    %1 = vector.load %arg2[%c0_1, %c0_2] : memref<5x32xf32, #tpu.memory_space<vmem>>, vector<5x32xf32>
    %cst = arith.constant dense<0.000000e+00> : vector<5x8xf32>
    %2 = tpu.matmul %1, %0, %cst {dimension_numbers = #tpu.dot_dimension_numbers<[1], [1], [0], [0], [0, 0, 1, 0], [], []>} : vector<5x32xf32>, vector<8x32xf32>, vector<5x8xf32> -> vector<5x8xf32>
    %c0_3 = arith.constant 0 : index
    %c0_4 = arith.constant 0 : index
    %3 = vector.load %arg3[%c0_3, %c0_4] : memref<5x1xf32, #tpu.memory_space<vmem>>, vector<5x1xf32>
    %4 = vector.broadcast %3 : vector<5x1xf32> to vector<5x8xf32>
    %5 = arith.addf %2, %4 : vector<5x8xf32>
    %cst_5 = arith.constant 0.000000e+00 : f32
    %6 = vector.broadcast %cst_5 : f32 to vector<5x8xf32>
    %7 = arith.maximumf %5, %6 : vector<5x8xf32>
    %c0_6 = arith.constant 0 : index
    %c0_7 = arith.constant 0 : index
    %8 = vector.load %arg4[%c0_6, %c0_7] : memref<10x5xf32, #tpu.memory_space<vmem>>, vector<10x5xf32>
    %cst_8 = arith.constant dense<0.000000e+00> : vector<10x8xf32>
    %9 = tpu.matmul %8, %7, %cst_8 {dimension_numbers = #tpu.dot_dimension_numbers<[1], [0], [0], [1], [0, 0, 1, 1], [], []>} : vector<10x5xf32>, vector<5x8xf32>, vector<10x8xf32> -> vector<10x8xf32>
    %c0_9 = arith.constant 0 : index
    %c0_10 = arith.constant 0 : index
    %10 = vector.load %arg5[%c0_9, %c0_10] : memref<10x1xf32, #tpu.memory_space<vmem>>, vector<10x1xf32>
    %11 = vector.broadcast %10 : vector<10x1xf32> to vector<10x8xf32>
    %12 = arith.addf %9, %11 : vector<10x8xf32>
    %cst_11 = arith.constant 0.000000e+00 : f32
    %13 = vector.broadcast %cst_11 : f32 to vector<10x8xf32>
    %14 = arith.maximumf %12, %13 : vector<10x8xf32>
    %c0_12 = arith.constant 0 : index
    %c0_13 = arith.constant 0 : index
    %15 = vector.load %arg6[%c0_12, %c0_13] : memref<15x10xf32, #tpu.memory_space<vmem>>, vector<15x10xf32>
    %cst_14 = arith.constant dense<0.000000e+00> : vector<15x8xf32>
    %16 = tpu.matmul %15, %14, %cst_14 {dimension_numbers = #tpu.dot_dimension_numbers<[1], [0], [0], [1], [0, 0, 1, 1], [], []>} : vector<15x10xf32>, vector<10x8xf32>, vector<15x8xf32> -> vector<15x8xf32>
    %c0_15 = arith.constant 0 : index
    %c0_16 = arith.constant 0 : index
    %17 = vector.load %arg7[%c0_15, %c0_16] : memref<15x1xf32, #tpu.memory_space<vmem>>, vector<15x1xf32>
    %18 = vector.broadcast %17 : vector<15x1xf32> to vector<15x8xf32>
    %19 = arith.addf %16, %18 : vector<15x8xf32>
    %cst_17 = arith.constant 0.000000e+00 : f32
    %20 = vector.broadcast %cst_17 : f32 to vector<15x8xf32>
    %21 = arith.maximumf %19, %20 : vector<15x8xf32>
    %c0_18 = arith.constant 0 : index
    %c0_19 = arith.constant 0 : index
    %22 = vector.load %arg8[%c0_18, %c0_19] : memref<2x15xf32, #tpu.memory_space<vmem>>, vector<2x15xf32>
    %cst_20 = arith.constant dense<0.000000e+00> : vector<2x8xf32>
    %23 = tpu.matmul %22, %21, %cst_20 {dimension_numbers = #tpu.dot_dimension_numbers<[1], [0], [0], [1], [0, 0, 1, 1], [], []>} : vector<2x15xf32>, vector<15x8xf32>, vector<2x8xf32> -> vector<2x8xf32>
    %c0_21 = arith.constant 0 : index
    %c0_22 = arith.constant 0 : index
    %24 = vector.load %arg9[%c0_21, %c0_22] : memref<2x1xf32, #tpu.memory_space<vmem>>, vector<2x1xf32>
    %25 = vector.broadcast %24 : vector<2x1xf32> to vector<2x8xf32>
    %26 = arith.addf %23, %25 : vector<2x8xf32>
    %27 = vector.extract_strided_slice %26 {offsets = [0, 0], sizes = [1, 8], strides = [1, 1]} : vector<2x8xf32> to vector<1x8xf32>
    %28 = vector.extract_strided_slice %26 {offsets = [1, 0], sizes = [1, 8], strides = [1, 1]} : vector<2x8xf32> to vector<1x8xf32>
    %29 = arith.subf %27, %28 : vector<1x8xf32>
    %30 = math.exp %29 : vector<1x8xf32>
    %cst_23 = arith.constant 1.000000e+00 : f32
    %31 = vector.broadcast %cst_23 : f32 to vector<1x8xf32>
    %32 = arith.addf %31, %30 : vector<1x8xf32>
    %cst_24 = arith.constant 1.000000e+00 : f32
    %33 = vector.broadcast %cst_24 : f32 to vector<1x8xf32>
    %34 = arith.divf %33, %32 : vector<1x8xf32>
    %35 = tpu.iota {dimensions = array<i32: 0>} : vector<2x8xi32>
    %c0_i32 = arith.constant 0 : i32
    %36 = vector.broadcast %c0_i32 : i32 to vector<2x8xi32>
    %37 = arith.cmpi eq, %35, %36 : vector<2x8xi32>
    %cst_25 = arith.constant 1.000000e+00 : f32
    %38 = vector.broadcast %cst_25 : f32 to vector<1x8xf32>
    %39 = arith.subf %38, %34 : vector<1x8xf32>
    %40 = vector.shape_cast %39 : vector<1x8xf32> to vector<1x8xf32>
    %41 = vector.broadcast %40 : vector<1x8xf32> to vector<2x8xf32>
    %42 = vector.shape_cast %34 : vector<1x8xf32> to vector<1x8xf32>
    %43 = vector.broadcast %42 : vector<1x8xf32> to vector<2x8xf32>
    %44 = arith.select %37, %41, %43 : vector<2x8xi1>, vector<2x8xf32>
    %c0_26 = arith.constant 0 : index
    %c0_27 = arith.constant 0 : index
    %45 = vector.load %arg10[%c0_26, %c0_27] : memref<2x8xf32, #tpu.memory_space<vmem>>, vector<2x8xf32>
    tpu.vector_store %arg10[%c0_26, %c0_27], %44 {strides = array<i32>} : memref<2x8xf32, #tpu.memory_space<vmem>>, vector<2x8xf32>,
    return
  }
  func.func @transform_0(%arg0: i32) -> (i32, i32) {
    %c0_i32 = arith.constant 0 : i32
    %c0_i32_0 = arith.constant 0 : i32
    return %arg0, %c0_i32 : i32, i32
  }
  func.func @transform_1(%arg0: i32) -> (i32, i32) {
    %c0_i32 = arith.constant 0 : i32
    %c0_i32_0 = arith.constant 0 : i32
    %c0_i32_1 = arith.constant 0 : i32
    return %c0_i32, %c0_i32_0 : i32, i32
  }
  func.func @transform_2(%arg0: i32) -> (i32, i32) {
    %c0_i32 = arith.constant 0 : i32
    %c0_i32_0 = arith.constant 0 : i32
    %c0_i32_1 = arith.constant 0 : i32
    return %c0_i32, %c0_i32_0 : i32, i32
  }
  func.func @transform_3(%arg0: i32) -> (i32, i32) {
    %c0_i32 = arith.constant 0 : i32
    %c0_i32_0 = arith.constant 0 : i32
    %c0_i32_1 = arith.constant 0 : i32
    return %c0_i32, %c0_i32_0 : i32, i32
  }
  func.func @transform_4(%arg0: i32) -> (i32, i32) {
    %c0_i32 = arith.constant 0 : i32
    %c0_i32_0 = arith.constant 0 : i32
    %c0_i32_1 = arith.constant 0 : i32
    return %c0_i32, %c0_i32_0 : i32, i32
  }
  func.func @transform_5(%arg0: i32) -> (i32, i32) {
    %c0_i32 = arith.constant 0 : i32
    %c0_i32_0 = arith.constant 0 : i32
    %c0_i32_1 = arith.constant 0 : i32
    return %c0_i32, %c0_i32_0 : i32, i32
  }
  func.func @transform_6(%arg0: i32) -> (i32, i32) {
    %c0_i32 = arith.constant 0 : i32
    %c0_i32_0 = arith.constant 0 : i32
    %c0_i32_1 = arith.constant 0 : i32
    return %c0_i32, %c0_i32_0 : i32, i32
  }
  func.func @transform_7(%arg0: i32) -> (i32, i32) {
    %c0_i32 = arith.constant 0 : i32
    %c0_i32_0 = arith.constant 0 : i32
    %c0_i32_1 = arith.constant 0 : i32
    return %c0_i32, %c0_i32_0 : i32, i32
  }
  func.func @transform_8(%arg0: i32) -> (i32, i32) {
    %c0_i32 = arith.constant 0 : i32
    %c0_i32_0 = arith.constant 0 : i32
    %c0_i32_1 = arith.constant 0 : i32
    return %c0_i32, %c0_i32_0 : i32, i32
  }
  func.func @transform_9(%arg0: i32) -> (i32, i32) {
    %c0_i32 = arith.constant 0 : i32
    %c0_i32_0 = arith.constant 0 : i32
    return %c0_i32, %arg0 : i32, i32
  }
}

</mosaic_0001>

<llo_original>
// kernel: tpu_custom_call.1
$region0: #{tpu_custom_call.1}
  #allocation0 [shape = 'u32[]', space=smem, size = 0x4, offset = 0x4, fixed_abs, tag = 'smem constant byte address 0x4 - core index']
  #allocation1 [shape = 'u32[144,128]{1,0:T(1,128)}', space=vmem, size = 0x12000, scoped, tag = 'internal scratch']
  %s0 = inlined_call_operand.vmem [shape: f32[8,32], index: 0, kind: input, shape index: {}]
  %s1 = inlined_call_operand.vmem [shape: f32[5,32], index: 1, kind: input, shape index: {}]
  %s2 = inlined_call_operand.vmem [shape: f32[5,1], index: 2, kind: input, shape index: {}]
  %s3 = inlined_call_operand.vmem [shape: f32[10,5], index: 3, kind: input, shape index: {}]
  %s4 = inlined_call_operand.vmem [shape: f32[10,1], index: 4, kind: input, shape index: {}]
  %s5 = inlined_call_operand.vmem [shape: f32[15,10], index: 5, kind: input, shape index: {}]
  %s6 = inlined_call_operand.vmem [shape: f32[15,1], index: 6, kind: input, shape index: {}]
  %s7 = inlined_call_operand.vmem [shape: f32[2,15], index: 7, kind: input, shape index: {}]
  %s8 = inlined_call_operand.vmem [shape: f32[2,1], index: 8, kind: input, shape index: {}]
  %s9 = inlined_call_operand.hbm [shape: f32[2,8], index: 9, kind: output, shape index: {}]
  %s10 = sld [smem:[#allocation0]]
  $region46: #{tpu_custom_call.1} parent=0
    _
  %s12 = ssub.s32 1, %s10
  %s13 = scalar_select 0, %s12, %s10
  $region1: #{tpu_custom_call.1} parent=0
    #allocation2 [shape = 'u8[1024]{0}', space=vmem, size = 0x400, scoped, tag = 'output window, operand 0, single buffered']
    #allocation3 [shape = 's32[1]{0}', space=sflag, size = 0x4, scoped, tag = 'scoped memory for tpu_custom_call.1']
    %14 = vsyncpa [#allocation3], 0
    // Predicated region
    $region2: #{tpu_custom_call.1} parent=1 // pred_check
      _
    $region3: #{tpu_custom_call.1} parent=1 // pred_check_branch
      %16 = sbr.rel (0) target = $region5
    $region4: #{tpu_custom_call.1} parent=1 // pred_region
      _
    $region5: #{tpu_custom_call.1} parent=1 // pred_fallthru
      _
    // Predicated region
    $region6: #{tpu_custom_call.1} parent=1 // pred_check
      _
    $region7: #{tpu_custom_call.1} parent=1 // pred_check_branch
      %18 = sbr.rel (0) target = $region9
    $region8: #{tpu_custom_call.1} parent=1 // pred_region
      _
    $region9: #{tpu_custom_call.1} parent=1 // pred_fallthru
      _
    // Predicated region
    $region10: #{tpu_custom_call.1} parent=1 // pred_check
      _
    $region11: #{tpu_custom_call.1} parent=1 // pred_check_branch
      %20 = sbr.rel (0) target = $region13
    $region12: #{tpu_custom_call.1} parent=1 // pred_region
      _
    $region13: #{tpu_custom_call.1} parent=1 // pred_fallthru
      _
    // Predicated region
    $region14: #{tpu_custom_call.1} parent=1 // pred_check
      _
    $region15: #{tpu_custom_call.1} parent=1 // pred_check_branch
      %22 = sbr.rel (0) target = $region17
    $region16: #{tpu_custom_call.1} parent=1 // pred_region
      _
    $region17: #{tpu_custom_call.1} parent=1 // pred_fallthru
      _
    // Predicated region
    $region18: #{tpu_custom_call.1} parent=1 // pred_check
      _
    $region19: #{tpu_custom_call.1} parent=1 // pred_check_branch
      %24 = sbr.rel (0) target = $region21
    $region20: #{tpu_custom_call.1} parent=1 // pred_region
      _
    $region21: #{tpu_custom_call.1} parent=1 // pred_fallthru
      _
    // Predicated region
    $region22: #{tpu_custom_call.1} parent=1 // pred_check
      _
    $region23: #{tpu_custom_call.1} parent=1 // pred_check_branch
      %26 = sbr.rel (0) target = $region25
    $region24: #{tpu_custom_call.1} parent=1 // pred_region
      _
    $region25: #{tpu_custom_call.1} parent=1 // pred_fallthru
      _
    // Predicated region
    $region26: #{tpu_custom_call.1} parent=1 // pred_check
      _
    $region27: #{tpu_custom_call.1} parent=1 // pred_check_branch
      %28 = sbr.rel (0) target = $region29
    $region28: #{tpu_custom_call.1} parent=1 // pred_region
      _
    $region29: #{tpu_custom_call.1} parent=1 // pred_fallthru
      _
    // Predicated region
    $region30: #{tpu_custom_call.1} parent=1 // pred_check
      _
    $region31: #{tpu_custom_call.1} parent=1 // pred_check_branch
      %30 = sbr.rel (0) target = $region33
    $region32: #{tpu_custom_call.1} parent=1 // pred_region
      _
    $region33: #{tpu_custom_call.1} parent=1 // pred_fallthru
      _
    // Predicated region
    $region34: #{tpu_custom_call.1} parent=1 // pred_check
      _
    $region35: #{tpu_custom_call.1} parent=1 // pred_check_branch
      %32 = sbr.rel (0) target = $region37
    $region36: #{tpu_custom_call.1} parent=1 // pred_region
      _
    $region37: #{tpu_custom_call.1} parent=1 // pred_fallthru
      _
    %v33 = vld [vmem:[%s0] sm:$0xff]
    %v34 = vld [vmem:[%s1] sm:$0x1f]
    %v35 = vld [vmem:[%s2] sm:$0x1f]
    %37 = vset.pattern.permute.xlu0 0
    %38 = vperm.xlu0 %37, %v35
    %v39 = vpop.permute.xlu0 %38
    %vm41 = vcmask 261120
    %v43 = vsel %vm41, %v34, 0
    %v46 = vsel %vm41, %v33, 0
    %48 = vmatprep.subr.mxu0 0.0
    %49 = vmatpush1.xpose.msra.mxu0 %v46
    %50 = vmatprep.subr.mxu0 0.0
    %51 = vmatpush1.xpose.msra.mxu0 0.0
    %52 = vmatprep.subr.mxu0 0.0
    %53 = vmatpush1.xpose.msra.mxu0 0.0
    %54 = vmatprep.subr.mxu0 0.0
    %55 = vmatpush1.xpose.msra.mxu0 0.0
    %56 = vmatprep.subr.mxu0 0.0
    %57 = vmatpush1.xpose.msra.mxu0 0.0
    %58 = vmatprep.subr.mxu0 0.0
    %59 = vmatpush1.xpose.msra.mxu0 0.0
    %60 = vmatprep.subr.mxu0 0.0
    %61 = vmatpush1.xpose.msra.mxu0 0.0
    %62 = vmatprep.subr.mxu0 0.0
    %63 = vmatpush1.xpose.msra.mxu0 0.0
    %64 = vmatprep.subr.mxu0 0.0
    %65 = vmatpush1.xpose.msra.mxu0 0.0
    %66 = vmatprep.subr.mxu0 0.0
    %67 = vmatpush1.xpose.msra.mxu0 0.0
    %68 = vmatprep.subr.mxu0 0.0
    %69 = vmatpush1.xpose.msra.mxu0 0.0
    %70 = vmatprep.subr.mxu0 0.0
    %71 = vmatpush1.xpose.msra.mxu0 0.0
    %72 = vmatprep.subr.mxu0 0.0
    %73 = vmatpush1.xpose.msra.mxu0 0.0
    %74 = vmatprep.subr.mxu0 0.0
    %75 = vmatpush1.xpose.msra.mxu0 0.0
    %76 = vmatprep.subr.mxu0 0.0
    %77 = vmatpush1.xpose.msra.mxu0 0.0
    %78 = vmatprep.subr.mxu0 0.0
    %79 = vmatpush1.xpose.msra.mxu0 0.0
    %80 = vmatprep.subr.mxu0 0.0
    %81 = vmatpush1.xpose.msra.mxu0 0.0
    %82 = vmatprep.subr.mxu0 0.0
    %83 = vmatpush1.xpose.msra.mxu0 0.0
    %84 = vmatprep.subr.mxu0 0.0
    %85 = vmatpush1.xpose.msra.mxu0 0.0
    %86 = vmatprep.subr.mxu0 0.0
    %87 = vmatpush1.xpose.msra.mxu0 0.0
    %88 = vmatprep.subr.mxu0 0.0
    %89 = vmatpush1.xpose.msra.mxu0 0.0
    %90 = vmatprep.subr.mxu0 0.0
    %91 = vmatpush1.xpose.msra.mxu0 0.0
    %92 = vmatprep.subr.mxu0 0.0
    %93 = vmatpush1.xpose.msra.mxu0 0.0
    %94 = vmatprep.subr.mxu0 0.0
    %95 = vmatpush1.xpose.msra.mxu0 0.0
    %96 = vmatprep.subr.mxu0 0.0
    %97 = vmatpush1.xpose.msra.mxu0 0.0
    %98 = vmatprep.subr.mxu0 0.0
    %99 = vmatpush1.xpose.msra.mxu0 0.0
    %100 = vmatprep.subr.mxu0 0.0
    %101 = vmatpush1.xpose.msra.mxu0 0.0
    %102 = vmatprep.subr.mxu0 0.0
    %103 = vmatpush1.xpose.msra.mxu0 0.0
    %104 = vmatprep.subr.mxu0 0.0
    %105 = vmatpush1.xpose.msra.mxu0 0.0
    %106 = vmatprep.subr.mxu0 0.0
    %107 = vmatpush1.xpose.msra.mxu0 0.0
    %108 = vmatprep.subr.mxu0 0.0
    %109 = vmatpush1.xpose.msra.mxu0 0.0
    %110 = vmatprep.subr.mxu0 0.0
    %111 = vmatpush1.xpose.msra.mxu0 0.0
    %112 = vmatprep.mubr.f32.mxu0 0.0
    %113 = vmatmul.mubr.f32.gmra.mrb[0].mxu0 %v43
    %v114 = vpop.f32.mrb[0].mxu0
    %v115 = vadd.f32 %v39, %v114
    %v116 = vpop.f32.mrb[0].mxu0
    %117 = vdwg.mxu0
    %v118 = vmax.f32 %v115, 0.0
    %v119 = vld [vmem:[%s3] sm:$0xff]
    %v120 = vld [vmem:[%s3 + $0x8] sm:$0x3]
    %v121 = vld [vmem:[%s4] sm:$0xff]
    %v122 = vld [vmem:[%s4 + $0x8] sm:$0x3]
    %124 = vset.pattern.permute.xlu0 0
    %125 = vperm.xlu0 %124, %v121
    %v126 = vpop.permute.xlu0 %125
    %129 = vset.pattern.permute.xlu0 0
    %130 = vperm.xlu0 %129, %v122
    %v131 = vpop.permute.xlu0 %130
    %vm133 = vcmask 39936
    %v135 = vsel %vm133, %v119, 0
    %v138 = vsel %vm133, %v120, 0
    %vm140 = vcmask 1044480
    %v142 = vsel %vm140, %v118, 0
    %144 = vmatprep.subr.mxu0 0.0
    %145 = vmatpush1.msra.mxu0 %v142
    %146 = vmatprep.subr.mxu0 0.0
    %147 = vmatpush1.msra.mxu0 0.0
    %148 = vmatprep.subr.mxu0 0.0
    %149 = vmatpush1.msra.mxu0 0.0
    %150 = vmatprep.subr.mxu0 0.0
    %151 = vmatpush1.msra.mxu0 0.0
    %152 = vmatprep.subr.mxu0 0.0
    %153 = vmatpush1.msra.mxu0 0.0
    %154 = vmatprep.subr.mxu0 0.0
    %155 = vmatpush1.msra.mxu0 0.0
    %156 = vmatprep.subr.mxu0 0.0
    %157 = vmatpush1.msra.mxu0 0.0
    %158 = vmatprep.subr.mxu0 0.0
    %159 = vmatpush1.msra.mxu0 0.0
    %160 = vmatprep.subr.mxu0 0.0
    %161 = vmatpush1.msra.mxu0 0.0
    %162 = vmatprep.subr.mxu0 0.0
    %163 = vmatpush1.msra.mxu0 0.0
    %164 = vmatprep.subr.mxu0 0.0
    %165 = vmatpush1.msra.mxu0 0.0
    %166 = vmatprep.subr.mxu0 0.0
    %167 = vmatpush1.msra.mxu0 0.0
    %168 = vmatprep.subr.mxu0 0.0
    %169 = vmatpush1.msra.mxu0 0.0
    %170 = vmatprep.subr.mxu0 0.0
    %171 = vmatpush1.msra.mxu0 0.0
    %172 = vmatprep.subr.mxu0 0.0
    %173 = vmatpush1.msra.mxu0 0.0
    %174 = vmatprep.subr.mxu0 0.0
    %175 = vmatpush1.msra.mxu0 0.0
    %176 = vmatprep.subr.mxu0 0.0
    %177 = vmatpush1.msra.mxu0 0.0
    %178 = vmatprep.subr.mxu0 0.0
    %179 = vmatpush1.msra.mxu0 0.0
    %180 = vmatprep.subr.mxu0 0.0
    %181 = vmatpush1.msra.mxu0 0.0
    %182 = vmatprep.subr.mxu0 0.0
    %183 = vmatpush1.msra.mxu0 0.0
    %184 = vmatprep.subr.mxu0 0.0
    %185 = vmatpush1.msra.mxu0 0.0
    %186 = vmatprep.subr.mxu0 0.0
    %187 = vmatpush1.msra.mxu0 0.0
    %188 = vmatprep.subr.mxu0 0.0
    %189 = vmatpush1.msra.mxu0 0.0
    %190 = vmatprep.subr.mxu0 0.0
    %191 = vmatpush1.msra.mxu0 0.0
    %192 = vmatprep.subr.mxu0 0.0
    %193 = vmatpush1.msra.mxu0 0.0
    %194 = vmatprep.subr.mxu0 0.0
    %195 = vmatpush1.msra.mxu0 0.0
    %196 = vmatprep.subr.mxu0 0.0
    %197 = vmatpush1.msra.mxu0 0.0
    %198 = vmatprep.subr.mxu0 0.0
    %199 = vmatpush1.msra.mxu0 0.0
    %200 = vmatprep.subr.mxu0 0.0
    %201 = vmatpush1.msra.mxu0 0.0
    %202 = vmatprep.subr.mxu0 0.0
    %203 = vmatpush1.msra.mxu0 0.0
    %204 = vmatprep.subr.mxu0 0.0
    %205 = vmatpush1.msra.mxu0 0.0
    %206 = vmatprep.subr.mxu0 0.0
    %207 = vmatpush1.msra.mxu0 0.0
    %208 = vmatprep.mubr.f32.mxu0 0.0
    %209 = vmatmul.mubr.f32.gmra.mrb[0].mxu0 %v135
    %v210 = vpop.f32.mrb[0].mxu0
    %v211 = vadd.f32 %v126, %v210
    %v212 = vpop.f32.mrb[0].mxu0
    %213 = vmatprep.mubr.f32.mxu0 0.0
    %214 = vmatmul.mubr.f32.gmra.mrb[0].mxu0 %v138
    %v215 = vpop.f32.mrb[0].mxu0
    %v216 = vadd.f32 %v131, %v215
    %v217 = vpop.f32.mrb[0].mxu0
    %218 = vdwg.mxu0
    %v219 = vmax.f32 %v211, 0.0
    %v220 = vmax.f32 %v216, 0.0
    %v221 = vld [vmem:[%s5] sm:$0xff]
    %v222 = vld [vmem:[%s5 + $0x8] sm:$0x7f]
    %v223 = vld [vmem:[%s6] sm:$0xff]
    %v224 = vld [vmem:[%s6 + $0x8] sm:$0x7f]
    %226 = vset.pattern.permute.xlu0 0
    %227 = vperm.xlu0 %226, %v223
    %v228 = vpop.permute.xlu0 %227
    %231 = vset.pattern.permute.xlu0 0
    %232 = vperm.xlu0 %231, %v224
    %v233 = vpop.permute.xlu0 %232
    %vm235 = vcmask 80896
    %v237 = vsel %vm235, %v221, 0
    %v240 = vsel %vm235, %v222, 0
    %vm242 = vcmask 1041408
    %v244 = vsel %vm242, %v220, 0
    %246 = vmatprep.subr.mxu0 0.0
    %247 = vmatpush1.msra.mxu0 %v219
    %248 = vmatprep.subr.mxu0 0.0
    %249 = vmatpush1.msra.mxu0 %v244
    %250 = vmatprep.subr.mxu0 0.0
    %251 = vmatpush1.msra.mxu0 0.0
    %252 = vmatprep.subr.mxu0 0.0
    %253 = vmatpush1.msra.mxu0 0.0
    %254 = vmatprep.subr.mxu0 0.0
    %255 = vmatpush1.msra.mxu0 0.0
    %256 = vmatprep.subr.mxu0 0.0
    %257 = vmatpush1.msra.mxu0 0.0
    %258 = vmatprep.subr.mxu0 0.0
    %259 = vmatpush1.msra.mxu0 0.0
    %260 = vmatprep.subr.mxu0 0.0
    %261 = vmatpush1.msra.mxu0 0.0
    %262 = vmatprep.subr.mxu0 0.0
    %263 = vmatpush1.msra.mxu0 0.0
    %264 = vmatprep.subr.mxu0 0.0
    %265 = vmatpush1.msra.mxu0 0.0
    %266 = vmatprep.subr.mxu0 0.0
    %267 = vmatpush1.msra.mxu0 0.0
    %268 = vmatprep.subr.mxu0 0.0
    %269 = vmatpush1.msra.mxu0 0.0
    %270 = vmatprep.subr.mxu0 0.0
    %271 = vmatpush1.msra.mxu0 0.0
    %272 = vmatprep.subr.mxu0 0.0
    %273 = vmatpush1.msra.mxu0 0.0
    %274 = vmatprep.subr.mxu0 0.0
    %275 = vmatpush1.msra.mxu0 0.0
    %276 = vmatprep.subr.mxu0 0.0
    %277 = vmatpush1.msra.mxu0 0.0
    %278 = vmatprep.subr.mxu0 0.0
    %279 = vmatpush1.msra.mxu0 0.0
    %280 = vmatprep.subr.mxu0 0.0
    %281 = vmatpush1.msra.mxu0 0.0
    %282 = vmatprep.subr.mxu0 0.0
    %283 = vmatpush1.msra.mxu0 0.0
    %284 = vmatprep.subr.mxu0 0.0
    %285 = vmatpush1.msra.mxu0 0.0
    %286 = vmatprep.subr.mxu0 0.0
    %287 = vmatpush1.msra.mxu0 0.0
    %288 = vmatprep.subr.mxu0 0.0
    %289 = vmatpush1.msra.mxu0 0.0
    %290 = vmatprep.subr.mxu0 0.0
    %291 = vmatpush1.msra.mxu0 0.0
    %292 = vmatprep.subr.mxu0 0.0
    %293 = vmatpush1.msra.mxu0 0.0
    %294 = vmatprep.subr.mxu0 0.0
    %295 = vmatpush1.msra.mxu0 0.0
    %296 = vmatprep.subr.mxu0 0.0
    %297 = vmatpush1.msra.mxu0 0.0
    %298 = vmatprep.subr.mxu0 0.0
    %299 = vmatpush1.msra.mxu0 0.0
    %300 = vmatprep.subr.mxu0 0.0
    %301 = vmatpush1.msra.mxu0 0.0
    %302 = vmatprep.subr.mxu0 0.0
    %303 = vmatpush1.msra.mxu0 0.0
    %304 = vmatprep.subr.mxu0 0.0
    %305 = vmatpush1.msra.mxu0 0.0
    %306 = vmatprep.subr.mxu0 0.0
    %307 = vmatpush1.msra.mxu0 0.0
    %308 = vmatprep.subr.mxu0 0.0
    %309 = vmatpush1.msra.mxu0 0.0
    %310 = vmatprep.mubr.f32.mxu0 0.0
    %311 = vmatmul.mubr.f32.gmra.mrb[0].mxu0 %v237
    %v312 = vpop.f32.mrb[0].mxu0
    %v313 = vadd.f32 %v228, %v312
    %v314 = vpop.f32.mrb[0].mxu0
    %315 = vmatprep.mubr.f32.mxu0 0.0
    %316 = vmatmul.mubr.f32.gmra.mrb[0].mxu0 %v240
    %v317 = vpop.f32.mrb[0].mxu0
    %v318 = vadd.f32 %v233, %v317
    %v319 = vpop.f32.mrb[0].mxu0
    %320 = vdwg.mxu0
    %v321 = vmax.f32 %v313, 0.0
    %v322 = vmax.f32 %v318, 0.0
    %v323 = vld [vmem:[%s7] sm:$0x3]
    %v324 = vld [vmem:[%s8] sm:$0x3]
    %326 = vset.pattern.permute.xlu0 0
    %327 = vperm.xlu0 %326, %v324
    %v328 = vpop.permute.xlu0 %327
    %vm330 = vcmask 121856
    %v332 = vsel %vm330, %v323, 0
    %vm334 = vcmask 1046528
    %v336 = vsel %vm334, %v322, 0
    %338 = vmatprep.subr.mxu0 0.0
    %339 = vmatpush1.msra.mxu0 %v321
    %340 = vmatprep.subr.mxu0 0.0
    %341 = vmatpush1.msra.mxu0 %v336
    %342 = vmatprep.subr.mxu0 0.0
    %343 = vmatpush1.msra.mxu0 0.0
    %344 = vmatprep.subr.mxu0 0.0
    %345 = vmatpush1.msra.mxu0 0.0
    %346 = vmatprep.subr.mxu0 0.0
    %347 = vmatpush1.msra.mxu0 0.0
    %348 = vmatprep.subr.mxu0 0.0
    %349 = vmatpush1.msra.mxu0 0.0
    %350 = vmatprep.subr.mxu0 0.0
    %351 = vmatpush1.msra.mxu0 0.0
    %352 = vmatprep.subr.mxu0 0.0
    %353 = vmatpush1.msra.mxu0 0.0
    %354 = vmatprep.subr.mxu0 0.0
    %355 = vmatpush1.msra.mxu0 0.0
    %356 = vmatprep.subr.mxu0 0.0
    %357 = vmatpush1.msra.mxu0 0.0
    %358 = vmatprep.subr.mxu0 0.0
    %359 = vmatpush1.msra.mxu0 0.0
    %360 = vmatprep.subr.mxu0 0.0
    %361 = vmatpush1.msra.mxu0 0.0
    %362 = vmatprep.subr.mxu0 0.0
    %363 = vmatpush1.msra.mxu0 0.0
    %364 = vmatprep.subr.mxu0 0.0
    %365 = vmatpush1.msra.mxu0 0.0
    %366 = vmatprep.subr.mxu0 0.0
    %367 = vmatpush1.msra.mxu0 0.0
    %368 = vmatprep.subr.mxu0 0.0
    %369 = vmatpush1.msra.mxu0 0.0
    %370 = vmatprep.subr.mxu0 0.0
    %371 = vmatpush1.msra.mxu0 0.0
    %372 = vmatprep.subr.mxu0 0.0
    %373 = vmatpush1.msra.mxu0 0.0
    %374 = vmatprep.subr.mxu0 0.0
    %375 = vmatpush1.msra.mxu0 0.0
    %376 = vmatprep.subr.mxu0 0.0
    %377 = vmatpush1.msra.mxu0 0.0
    %378 = vmatprep.subr.mxu0 0.0
    %379 = vmatpush1.msra.mxu0 0.0
    %380 = vmatprep.subr.mxu0 0.0
    %381 = vmatpush1.msra.mxu0 0.0
    %382 = vmatprep.subr.mxu0 0.0
    %383 = vmatpush1.msra.mxu0 0.0
    %384 = vmatprep.subr.mxu0 0.0
    %385 = vmatpush1.msra.mxu0 0.0
    %386 = vmatprep.subr.mxu0 0.0
    %387 = vmatpush1.msra.mxu0 0.0
    %388 = vmatprep.subr.mxu0 0.0
    %389 = vmatpush1.msra.mxu0 0.0
    %390 = vmatprep.subr.mxu0 0.0
    %391 = vmatpush1.msra.mxu0 0.0
    %392 = vmatprep.subr.mxu0 0.0
    %393 = vmatpush1.msra.mxu0 0.0
    %394 = vmatprep.subr.mxu0 0.0
    %395 = vmatpush1.msra.mxu0 0.0
    %396 = vmatprep.subr.mxu0 0.0
    %397 = vmatpush1.msra.mxu0 0.0
    %398 = vmatprep.subr.mxu0 0.0
    %399 = vmatpush1.msra.mxu0 0.0
    %400 = vmatprep.subr.mxu0 0.0
    %401 = vmatpush1.msra.mxu0 0.0
    %402 = vmatprep.mubr.f32.mxu0 0.0
    %403 = vmatmul.mubr.f32.gmra.mrb[0].mxu0 %v332
    %v404 = vpop.f32.mrb[0].mxu0
    %v405 = vadd.f32 %v328, %v404
    %v406 = vpop.f32.mrb[0].mxu0
    %407 = vdwg.mxu0
    %v409 = vrot.slane %v405, 1
    %v411 = vsub.f32 %v405, %v409
    %v412 = vmul.f32 %v411, 1.442695
    %v413 = vpow.pop %v412
    %v414 = vadd.f32 %v413, 1.0
    %v415 = vrcp.pop %v414
    %v416 = vmul.f32 1.0, %v415
    %v417 = vlaneseq
    %v418 = vshrl.u32 %v417, 7
    %vm419 = vcmp.eq.s32.totalorder %v418, 0
    %v420 = vsub.f32 1.0, %v416
    %v421 = vlaneseq
    %v422 = vshrl.u32 %v421, 7
    %v423 = vsub.s32 0, %v422
    %v424 = vrot.slane %v420, %v423
    %v425 = vlaneseq
    %v426 = vshrl.u32 %v425, 7
    %v427 = vsub.s32 0, %v426
    %v428 = vrot.slane %v416, %v427
    %v429 = vsel %vm419, %v424, %v428
    %vm430 = vcmask 58368
    %431 = vst.msk [vmem:[#allocation2] sm:$0x3] %vm430, %v429
    // Predicated region
    $region38: #{tpu_custom_call.1} parent=1 // pred_check
      _
    $region39: #{tpu_custom_call.1} parent=1 // pred_check_branch
      %433 = sbr.rel (0) target = $region41
    $region40: #{tpu_custom_call.1} parent=1 // pred_region
      %s435 = ssub.s32 32, 32
      %436 = vsyncadd [#allocation3], %s435
      %s438 = sshll.u32 [#allocation2], 4
      %s439 = int_to_ptr.vmem [resolvable:$true] %s438
      %441 = dma.vmem_to_hbm [thread:$0]  %s439, 32, %s9, [#allocation3]
    $region41: #{tpu_custom_call.1} parent=1 // pred_fallthru
      _
    // Predicated region
    $region42: #{tpu_custom_call.1} parent=1 // pred_check
      _
    $region43: #{tpu_custom_call.1} parent=1 // pred_check_branch
      %443 = sbr.rel (0) target = $region45
    $region44: #{tpu_custom_call.1} parent=1 // pred_region
      %444 = dma.done [#allocation3], 32
    $region45: #{tpu_custom_call.1} parent=1 // pred_fallthru
      _
    %445 = vsyncpa [#allocation3], 1

</llo_original>
